<compile_context>
chip_gen: v5e
topology: v5e:2x2
jax: 0.10.0
libtpu: 0.0.40
codegen_flags: <defaults>
</compile_context>

<pallas_src>
import math
import functools

import jax
import jax.numpy as jnp
from jax.experimental import pallas as pl
from jax.experimental.pallas import tpu as pltpu


def _attn_dropout_kernel(q_ref, k_ref, v_ref, bits_ref, o_ref, *,
                         scale, apply_dropout, keep_threshold, inv_keep):
    q = q_ref[...]            # (S, D)
    k = k_ref[...]            # (S, D)
    v = v_ref[...]            # (S, D)

    # Q @ K^T without materializing the transpose: contract the lane (D) axis
    # of both operands directly on the MXU.
    qk = jax.lax.dot_general(
        q, k, (((1,), (1,)), ((), ())),
        preferred_element_type=jnp.float32,
    ) * scale                 # (S, S)

    # Numerically-stable softmax along the last axis.
    m = jnp.max(qk, axis=-1, keepdims=True)
    e = jnp.exp(qk - m)
    denom = jnp.sum(e, axis=-1, keepdims=True)
    sm = e * pl.reciprocal(denom, approx=True)

    if apply_dropout:
        # Integer-domain threshold: keep element iff bits < keep_prob * 2^32.
        keep = bits_ref[...] < jnp.uint32(keep_threshold)
        sm = jnp.where(keep, sm * inv_keep, 0.0)

    o_ref[...] = jnp.dot(sm, v, preferred_element_type=jnp.float32).astype(o_ref.dtype)


def attention_dropout(query, key, value, *, num_heads=1, p=0.5, dropout_key=None):
    """Batched attention+dropout. query/key/value: (H, S, D)."""
    H, S, D = query.shape
    inv_scale_factor = 1.0 / math.sqrt(math.sqrt(num_heads))
    scale = 1.0 / inv_scale_factor            # qk.div(inv_scale_factor)
    keep_prob = 1.0 - p
    apply_dropout = p > 0.0

    if dropout_key is None:
        dropout_key = jax.random.PRNGKey(0)
    # Distinct random bits per head -> distinct dropout mask per grid step.
    bits = jax.random.bits(dropout_key, (H, S, S), dtype=jnp.uint32)

    keep_threshold = int(keep_prob * (2 ** 32)) if apply_dropout else 0
    inv_keep = (1.0 / keep_prob) if apply_dropout else 1.0

    kern = functools.partial(
        _attn_dropout_kernel,
        scale=scale,
        apply_dropout=apply_dropout,
        keep_threshold=keep_threshold,
        inv_keep=inv_keep,
    )

    return pl.pallas_call(
        kern,
        out_shape=jax.ShapeDtypeStruct((H, S, D), query.dtype),
        grid=(H,),
        in_specs=[
            pl.BlockSpec((None, S, D), lambda h: (h, 0, 0)),   # Q
            pl.BlockSpec((None, S, D), lambda h: (h, 0, 0)),   # K
            pl.BlockSpec((None, S, D), lambda h: (h, 0, 0)),   # V
            pl.BlockSpec((None, S, S), lambda h: (h, 0, 0)),   # dropout bits
        ],
        out_specs=pl.BlockSpec((None, S, D), lambda h: (h, 0, 0)),
        compiler_params=pltpu.CompilerParams(
            dimension_semantics=("parallel",),   # heads shard across TCs (v7x)
        ),
    )(query, key, value, bits)


def model_forward(query, key, value, *, num_heads=1, p=0.5, dropout_key=None):
    """2-D (S, D) interface matching the PyTorch module's forward."""
    out = attention_dropout(query[None], key[None], value[None],
                            num_heads=num_heads, p=p, dropout_key=dropout_key)
    return out[0]


if __name__ == "__main__":
    shape = (16, 128)    # matches the module's `shape`
    num_heads = 1

    root = jax.random.PRNGKey(0)
    kq, kk, kv, kd = jax.random.split(root, 4)
    query = jax.random.normal(kq, shape, dtype=jnp.float32)
    key = jax.random.normal(kk, shape, dtype=jnp.float32)
    value = jax.random.normal(kv, shape, dtype=jnp.float32)

    # Module-equivalent single-head case.
    out = model_forward(query, key, value, num_heads=num_heads, p=0.5, dropout_key=kd)
    out = jax.block_until_ready(out)
    assert out.shape == shape and out.dtype == jnp.float32

    # Batched multi-head path (parallel grid over heads) sanity run.
    H = 4
    kq2, kk2, kv2, kd2 = jax.random.split(jax.random.PRNGKey(1), 4)
    qb = jax.random.normal(kq2, (H,) + shape, dtype=jnp.float32)
    kb = jax.random.normal(kk2, (H,) + shape, dtype=jnp.float32)
    vb = jax.random.normal(kv2, (H,) + shape, dtype=jnp.float32)
    outb = jax.block_until_ready(
        attention_dropout(qb, kb, vb, num_heads=num_heads, p=0.5, dropout_key=kd2))
    assert outb.shape == (H,) + shape and outb.dtype == jnp.float32

    print("KERNEL_OK")
</pallas_src>

<mosaic_0001>
module attributes {stable_mosaic.version = 11 : i64} {
  func.func @_attn_dropout_kernel(%arg0: i32, %arg1: memref<1x16x128xf32, #tpu.memory_space<vmem>>, %arg2: memref<1x16x128xf32, #tpu.memory_space<vmem>>, %arg3: memref<1x16x128xf32, #tpu.memory_space<vmem>>, %arg4: memref<1x16x16xi32, #tpu.memory_space<vmem>>, %arg5: memref<1x16x128xf32, #tpu.memory_space<vmem>>) attributes {dimension_semantics = [#tpu.dimension_semantics<parallel>], iteration_bounds = array<i64: 1>, scalar_prefetch = 0 : i64, scratch_operands = 0 : i64, tpu.core_type = #tpu.core_type<tc>, window_params = [{transform_indices = @transform_0, window_bounds = array<i64: 1, 16, 128>}, {transform_indices = @transform_1, window_bounds = array<i64: 1, 16, 128>}, {transform_indices = @transform_2, window_bounds = array<i64: 1, 16, 128>}, {transform_indices = @transform_3, window_bounds = array<i64: 1, 16, 16>}, {transform_indices = @transform_4, window_bounds = array<i64: 1, 16, 128>}]} {
    %c0 = arith.constant 0 : index
    %c0_0 = arith.constant 0 : index
    %c0_1 = arith.constant 0 : index
    %0 = vector.load %arg1[%c0, %c0_0, %c0_1] : memref<1x16x128xf32, #tpu.memory_space<vmem>>, vector<1x16x128xf32>
    %1 = vector.shape_cast %0 : vector<1x16x128xf32> to vector<16x128xf32>
    %c0_2 = arith.constant 0 : index
    %c0_3 = arith.constant 0 : index
    %c0_4 = arith.constant 0 : index
    %2 = vector.load %arg2[%c0_2, %c0_3, %c0_4] : memref<1x16x128xf32, #tpu.memory_space<vmem>>, vector<1x16x128xf32>
    %3 = vector.shape_cast %2 : vector<1x16x128xf32> to vector<16x128xf32>
    %c0_5 = arith.constant 0 : index
    %c0_6 = arith.constant 0 : index
    %c0_7 = arith.constant 0 : index
    %4 = vector.load %arg3[%c0_5, %c0_6, %c0_7] : memref<1x16x128xf32, #tpu.memory_space<vmem>>, vector<1x16x128xf32>
    %5 = vector.shape_cast %4 : vector<1x16x128xf32> to vector<16x128xf32>
    %cst = arith.constant dense<0.000000e+00> : vector<16x16xf32>
    %6 = tpu.matmul %1, %3, %cst {dimension_numbers = #tpu.dot_dimension_numbers<[1], [1], [0], [0], [0, 0, 1, 0], [], []>} : vector<16x128xf32>, vector<16x128xf32>, vector<16x16xf32> -> vector<16x16xf32>
    %cst_8 = arith.constant 1.000000e+00 : f32
    %7 = vector.broadcast %cst_8 : f32 to vector<16x16xf32>
    %8 = arith.mulf %6, %7 : vector<16x16xf32>
    %cst_9 = arith.constant dense<0xFF800000> : vector<16xf32>
    %9 = vector.multi_reduction <maximumf>, %8, %cst_9 [1] : vector<16x16xf32> to vector<16xf32>
    %10 = vector.shape_cast %9 : vector<16xf32> to vector<16x1xf32>
    %11 = vector.broadcast %10 : vector<16x1xf32> to vector<16x16xf32>
    %12 = arith.subf %8, %11 : vector<16x16xf32>
    %13 = math.exp %12 : vector<16x16xf32>
    %cst_10 = arith.constant dense<0.000000e+00> : vector<16xf32>
    %14 = vector.multi_reduction <add>, %13, %cst_10 [1] : vector<16x16xf32> to vector<16xf32>
    %15 = vector.shape_cast %14 : vector<16xf32> to vector<16x1xf32>
    %16 = tpu.reciprocal %15 {approx = true} : vector<16x1xf32> -> vector<16x1xf32>
    %17 = vector.broadcast %16 : vector<16x1xf32> to vector<16x16xf32>
    %18 = arith.mulf %13, %17 : vector<16x16xf32>
    %c0_11 = arith.constant 0 : index
    %c0_12 = arith.constant 0 : index
    %c0_13 = arith.constant 0 : index
    %19 = vector.load %arg4[%c0_11, %c0_12, %c0_13] : memref<1x16x16xi32, #tpu.memory_space<vmem>>, vector<1x16x16xi32>
    %20 = vector.shape_cast %19 : vector<1x16x16xi32> to vector<16x16xi32>
    %c-2147483648_i32 = arith.constant -2147483648 : i32
    %21 = vector.broadcast %c-2147483648_i32 : i32 to vector<16x16xi32>
    %22 = arith.cmpi ult, %20, %21 : vector<16x16xi32>
    %cst_14 = arith.constant 2.000000e+00 : f32
    %23 = vector.broadcast %cst_14 : f32 to vector<16x16xf32>
    %24 = arith.mulf %18, %23 : vector<16x16xf32>
    %cst_15 = arith.constant 0.000000e+00 : f32
    %25 = vector.broadcast %cst_15 : f32 to vector<16x16xf32>
    %26 = arith.select %22, %24, %25 : vector<16x16xi1>, vector<16x16xf32>
    %cst_16 = arith.constant dense<0.000000e+00> : vector<16x128xf32>
    %27 = tpu.matmul %26, %5, %cst_16 {dimension_numbers = #tpu.dot_dimension_numbers<[1], [0], [0], [1], [0, 0, 1, 1], [], []>} : vector<16x16xf32>, vector<16x128xf32>, vector<16x128xf32> -> vector<16x128xf32>
    %c0_17 = arith.constant 0 : index
    %c0_18 = arith.constant 0 : index
    %c0_19 = arith.constant 0 : index
    %28 = vector.load %arg5[%c0_17, %c0_18, %c0_19] : memref<1x16x128xf32, #tpu.memory_space<vmem>>, vector<1x16x128xf32>
    %29 = vector.shape_cast %28 : vector<1x16x128xf32> to vector<16x128xf32>
    %30 = vector.shape_cast %27 : vector<16x128xf32> to vector<1x16x128xf32>
    tpu.vector_store %arg5[%c0_17, %c0_18, %c0_19], %30 {strides = array<i32>} : memref<1x16x128xf32, #tpu.memory_space<vmem>>, vector<1x16x128xf32>,
    return
  }
  func.func @transform_0(%arg0: i32) -> (i32, i32, i32) {
    %c0_i32 = arith.constant 0 : i32
    %c0_i32_0 = arith.constant 0 : i32
    %c0_i32_1 = arith.constant 0 : i32
    return %arg0, %c0_i32, %c0_i32_0 : i32, i32, i32
  }
  func.func @transform_1(%arg0: i32) -> (i32, i32, i32) {
    %c0_i32 = arith.constant 0 : i32
    %c0_i32_0 = arith.constant 0 : i32
    %c0_i32_1 = arith.constant 0 : i32
    return %arg0, %c0_i32, %c0_i32_0 : i32, i32, i32
  }
  func.func @transform_2(%arg0: i32) -> (i32, i32, i32) {
    %c0_i32 = arith.constant 0 : i32
    %c0_i32_0 = arith.constant 0 : i32
    %c0_i32_1 = arith.constant 0 : i32
    return %arg0, %c0_i32, %c0_i32_0 : i32, i32, i32
  }
  func.func @transform_3(%arg0: i32) -> (i32, i32, i32) {
    %c0_i32 = arith.constant 0 : i32
    %c0_i32_0 = arith.constant 0 : i32
    %c0_i32_1 = arith.constant 0 : i32
    return %arg0, %c0_i32, %c0_i32_0 : i32, i32, i32
  }
  func.func @transform_4(%arg0: i32) -> (i32, i32, i32) {
    %c0_i32 = arith.constant 0 : i32
    %c0_i32_0 = arith.constant 0 : i32
    %c0_i32_1 = arith.constant 0 : i32
    return %arg0, %c0_i32, %c0_i32_0 : i32, i32, i32
  }
}

</mosaic_0001>

<llo_original>
// kernel: tpu_custom_call.1
$region0: #{tpu_custom_call.1}
  #allocation0 [shape = 'u32[]', space=smem, size = 0x4, offset = 0x4, fixed_abs, tag = 'smem constant byte address 0x4 - core index']
  #allocation1 [shape = 'u32[72,128]{1,0:T(1,128)}', space=vmem, size = 0x9000, scoped, tag = 'internal scratch']
  %s0 = inlined_call_operand.hbm [shape: f32[1,16,128], index: 0, kind: input, shape index: {}]
  %s1 = inlined_call_operand.hbm [shape: f32[1,16,128], index: 1, kind: input, shape index: {}]
  %s2 = inlined_call_operand.hbm [shape: f32[1,16,128], index: 2, kind: input, shape index: {}]
  %s3 = inlined_call_operand.hbm [shape: u32[1,16,16], index: 3, kind: input, shape index: {}]
  %s4 = inlined_call_operand.hbm [shape: f32[1,16,128], index: 4, kind: output, shape index: {}]
  %s5 = sld [smem:[#allocation0]]
  $region42: #{tpu_custom_call.1} parent=0
    _
  %s7 = ssub.s32 1, %s5
  %s8 = scalar_select 0, %s7, %s5
  $region1: #{tpu_custom_call.1} parent=0
    #allocation2 [shape = 'u8[8192]{0}', space=vmem, size = 0x2000, scoped, tag = 'input window, operand 0, single buffered']
    #allocation3 [shape = 's32[1]{0}', space=sflag, size = 0x4, scoped, tag = 'scoped memory for tpu_custom_call.1']
    #allocation4 [shape = 's32[1]{0}', space=sflag, size = 0x4, scoped, tag = 'scoped memory for tpu_custom_call.1']
    #allocation5 [shape = 'u8[8192]{0}', space=vmem, size = 0x2000, scoped, tag = 'input window, operand 1, single buffered']
    #allocation6 [shape = 's32[1]{0}', space=sflag, size = 0x4, scoped, tag = 'scoped memory for tpu_custom_call.1']
    #allocation7 [shape = 'u8[8192]{0}', space=vmem, size = 0x2000, scoped, tag = 'input window, operand 2, single buffered']
    #allocation8 [shape = 'u8[8192]{0}', space=vmem, size = 0x2000, scoped, tag = 'input window, operand 3, single buffered']
    #allocation9 [shape = 's32[1]{0}', space=sflag, size = 0x4, scoped, tag = 'scoped memory for tpu_custom_call.1']
    #allocation10 [shape = 'u8[8192]{0}', space=vmem, size = 0x2000, scoped, tag = 'output window, operand 0, single buffered']
    %9 = vsyncpa [#allocation3], 0
    %10 = vsyncpa [#allocation6], 0
    %11 = vsyncpa [#allocation9], 0
    %12 = vsyncpa [#allocation4], 0
    // Predicated region
    $region2: #{tpu_custom_call.1} parent=1 // pred_check
      _
    $region3: #{tpu_custom_call.1} parent=1 // pred_check_branch
      %14 = sbr.rel (0) target = $region5
    $region4: #{tpu_custom_call.1} parent=1 // pred_region
      %16 = vsyncadd [#allocation3], 0
      %s17 = sshll.u32 %s0, 4
      %s18 = int_to_ptr.hbm [resolvable:$true] %s17
      %s19 = sshll.u32 [#allocation2], 4
      %s20 = int_to_ptr.vmem [resolvable:$true] %s19
      %25 = dma.hbm_to_vmem [thread:$0]  %s18, 256, %s20, [#allocation3], 128, 128, 8
    $region5: #{tpu_custom_call.1} parent=1 // pred_fallthru
      _
    // Predicated region
    $region6: #{tpu_custom_call.1} parent=1 // pred_check
      _
    $region7: #{tpu_custom_call.1} parent=1 // pred_check_branch
      %27 = sbr.rel (0) target = $region9
    $region8: #{tpu_custom_call.1} parent=1 // pred_region
      %29 = vsyncadd [#allocation6], 0
      %s30 = sshll.u32 %s1, 4
      %s31 = int_to_ptr.hbm [resolvable:$true] %s30
      %s32 = sshll.u32 [#allocation5], 4
      %s33 = int_to_ptr.vmem [resolvable:$true] %s32
      %38 = dma.hbm_to_vmem [thread:$0]  %s31, 256, %s33, [#allocation6], 128, 128, 8
    $region9: #{tpu_custom_call.1} parent=1 // pred_fallthru
      _
    // Predicated region
    $region10: #{tpu_custom_call.1} parent=1 // pred_check
      _
    $region11: #{tpu_custom_call.1} parent=1 // pred_check_branch
      %40 = sbr.rel (0) target = $region13
    $region12: #{tpu_custom_call.1} parent=1 // pred_region
      %42 = vsyncadd [#allocation6], 0
      %s43 = sshll.u32 %s2, 4
      %s44 = int_to_ptr.hbm [resolvable:$true] %s43
      %s45 = sshll.u32 [#allocation7], 4
      %s46 = int_to_ptr.vmem [resolvable:$true] %s45
      %51 = dma.hbm_to_vmem [thread:$0]  %s44, 256, %s46, [#allocation6], 128, 128, 8
    $region13: #{tpu_custom_call.1} parent=1 // pred_fallthru
      _
    // Predicated region
    $region14: #{tpu_custom_call.1} parent=1 // pred_check
      _
    $region15: #{tpu_custom_call.1} parent=1 // pred_check_branch
      %53 = sbr.rel (0) target = $region17
    $region16: #{tpu_custom_call.1} parent=1 // pred_region
      %55 = vsyncadd [#allocation9], 0
      %s56 = sshll.u32 %s3, 4
      %s57 = int_to_ptr.hbm [resolvable:$true] %s56
      %s58 = sshll.u32 [#allocation8], 4
      %s59 = int_to_ptr.vmem [resolvable:$true] %s58
      %64 = dma.hbm_to_vmem [thread:$0]  %s57, 256, %s59, [#allocation9], 128, 128, 8
    $region17: #{tpu_custom_call.1} parent=1 // pred_fallthru
      _
    // Predicated region
    $region18: #{tpu_custom_call.1} parent=1 // pred_check
      _
    $region19: #{tpu_custom_call.1} parent=1 // pred_check_branch
      %66 = sbr.rel (0) target = $region21
    $region20: #{tpu_custom_call.1} parent=1 // pred_region
      %68 = dma.done [#allocation3], 256
    $region21: #{tpu_custom_call.1} parent=1 // pred_fallthru
      _
    // Predicated region
    $region22: #{tpu_custom_call.1} parent=1 // pred_check
      _
    $region23: #{tpu_custom_call.1} parent=1 // pred_check_branch
      %70 = sbr.rel (0) target = $region25
    $region24: #{tpu_custom_call.1} parent=1 // pred_region
      %72 = dma.done [#allocation6], 256
    $region25: #{tpu_custom_call.1} parent=1 // pred_fallthru
      _
    // Predicated region
    $region26: #{tpu_custom_call.1} parent=1 // pred_check
      _
    $region27: #{tpu_custom_call.1} parent=1 // pred_check_branch
      %74 = sbr.rel (0) target = $region29
    $region28: #{tpu_custom_call.1} parent=1 // pred_region
      %76 = dma.done [#allocation6], 256
    $region29: #{tpu_custom_call.1} parent=1 // pred_fallthru
      _
    // Predicated region
    $region30: #{tpu_custom_call.1} parent=1 // pred_check
      _
    $region31: #{tpu_custom_call.1} parent=1 // pred_check_branch
      %78 = sbr.rel (0) target = $region33
    $region32: #{tpu_custom_call.1} parent=1 // pred_region
      %80 = dma.done [#allocation9], 256
    $region33: #{tpu_custom_call.1} parent=1 // pred_fallthru
      _
    %v81 = vld [vmem:[#allocation2] sm:$0xff]
    %v82 = vld [vmem:[#allocation2 + $0x8] sm:$0xff]
    %v83 = vld [vmem:[#allocation5] sm:$0xff]
    %v84 = vld [vmem:[#allocation5 + $0x8] sm:$0xff]
    %v85 = vld [vmem:[#allocation7] sm:$0xff]
    %v86 = vld [vmem:[#allocation7 + $0x8] sm:$0xff]
    %87 = vmatpush.xpose.msra.mxu0 0.0
    %88 = vmatpush.xpose.msra.mxu0 0.0
    %89 = vmatpush.xpose.msra.mxu0 0.0
    %90 = vmatpush.xpose.msra.mxu0 0.0
    %91 = vmatpush.xpose.msra.mxu0 0.0
    %92 = vmatpush.xpose.msra.mxu0 0.0
    %93 = vmatpush.xpose.msra.mxu0 0.0
    %94 = vmatpush.xpose.msra.mxu0 0.0
    %95 = vmatpush.xpose.msra.mxu0 0.0
    %96 = vmatpush.xpose.msra.mxu0 0.0
    %97 = vmatpush.xpose.msra.mxu0 0.0
    %98 = vmatpush.xpose.msra.mxu0 0.0
    %99 = vmatpush.xpose.msra.mxu0 0.0
    %100 = vmatpush.xpose.msra.mxu0 0.0
    %101 = vmatpush.xpose.msra.mxu0 %v84
    %102 = vmatpush.xpose.msra.mxu0 %v83
    %103 = vmatmul.f32.gmra.mxu0 %v81
    %v104 = vpop.f32.mrf.mxu0
    %v105 = vadd.f32 0.0, %v104
    %106 = vmatmul.f32.gmra.mxu0 %v82
    %v107 = vpop.f32.mrf.mxu0
    %v108 = vadd.f32 0.0, %v107
    %109 = vdwg.mxu0
    %vm110 = vcmask 130048
    %v111 = vsel %vm110, %v105, -inf
    %112 = vmax.xlane.f32.xlu0 %v111
    %v113 = vpop.xlane.xlu0 %112
    %v114 = vsel %vm110, %v108, -inf
    %115 = vmax.xlane.f32.xlu0 %v114
    %v116 = vpop.xlane.xlu0 %115
    %v117 = vsub.f32 %v105, %v113
    %v118 = vsub.f32 %v108, %v116
    %v119 = vmul.f32 %v117, 1.442695
    %v120 = vpow.pop %v119
    %v121 = vmul.f32 %v118, 1.442695
    %v122 = vpow.pop %v121
    %v123 = vsel %vm110, %v120, 0.0
    %124 = vadd.xlane.f32.xlu0 %v123
    %v125 = vpop.xlane.xlu0 %124
    %v126 = vsel %vm110, %v122, 0.0
    %127 = vadd.xlane.f32.xlu0 %v126
    %v128 = vpop.xlane.xlu0 %127
    %v129 = vrcp.pop %v125
    %v130 = vrcp.pop %v128
    %v131 = vmul.f32 %v120, %v129
    %v132 = vmul.f32 %v122, %v130
    %v133 = vld [vmem:[#allocation8] sm:$0xff]
    %v134 = vld [vmem:[#allocation8 + $0x8] sm:$0xff]
    %v135 = vadd.s32 %v133, 2147483648
    %vm137 = vcmp.lt.s32.totalorder %v135, 0
    %v138 = vadd.s32 %v134, 2147483648
    %vm140 = vcmp.lt.s32.totalorder %v138, 0
    %v141 = vmul.f32 %v131, 2.0
    %v142 = vmul.f32 %v132, 2.0
    %v143 = vsel %vm137, %v141, 0.0
    %v144 = vsel %vm140, %v142, 0.0
    %v146 = vsel %vm110, %v143, 0
    %v149 = vsel %vm110, %v144, 0
    %151 = vmatpush.msra.mxu0 0.0
    %152 = vmatpush.msra.mxu0 0.0
    %153 = vmatpush.msra.mxu0 0.0
    %154 = vmatpush.msra.mxu0 0.0
    %155 = vmatpush.msra.mxu0 0.0
    %156 = vmatpush.msra.mxu0 0.0
    %157 = vmatpush.msra.mxu0 0.0
    %158 = vmatpush.msra.mxu0 0.0
    %159 = vmatpush.msra.mxu0 0.0
    %160 = vmatpush.msra.mxu0 0.0
    %161 = vmatpush.msra.mxu0 0.0
    %162 = vmatpush.msra.mxu0 0.0
    %163 = vmatpush.msra.mxu0 0.0
    %164 = vmatpush.msra.mxu0 0.0
    %165 = vmatpush.msra.mxu0 %v86
    %166 = vmatpush.msra.mxu0 %v85
    %167 = vmatmul.f32.gmra.mxu0 %v146
    %v168 = vpop.f32.mrf.mxu0
    %v169 = vadd.f32 0.0, %v168
    %170 = vmatmul.f32.gmra.mxu0 %v149
    %v171 = vpop.f32.mrf.mxu0
    %v172 = vadd.f32 0.0, %v171
    %173 = vdwg.mxu0
    %174 = vst [vmem:[#allocation10] sm:$0xff] %v169
    %175 = vst [vmem:[#allocation10 + $0x8] sm:$0xff] %v172
    // Predicated region
    $region34: #{tpu_custom_call.1} parent=1 // pred_check
      _
    $region35: #{tpu_custom_call.1} parent=1 // pred_check_branch
      %177 = sbr.rel (0) target = $region37
    $region36: #{tpu_custom_call.1} parent=1 // pred_region
      %179 = vsyncadd [#allocation4], 0
      %s180 = sshll.u32 [#allocation10], 4
      %s181 = int_to_ptr.vmem [resolvable:$true] %s180
      %s182 = sshll.u32 %s4, 4
      %s183 = int_to_ptr.hbm [resolvable:$true] %s182
      %188 = dma.vmem_to_hbm [thread:$0]  %s181, 256, %s183, [#allocation4], 128, 128, 8
    $region37: #{tpu_custom_call.1} parent=1 // pred_fallthru
      _
    // Predicated region
    $region38: #{tpu_custom_call.1} parent=1 // pred_check
      _
    $region39: #{tpu_custom_call.1} parent=1 // pred_check_branch
      %190 = sbr.rel (0) target = $region41
    $region40: #{tpu_custom_call.1} parent=1 // pred_region
      %192 = dma.done [#allocation4], 256
    $region41: #{tpu_custom_call.1} parent=1 // pred_fallthru
      _
    %193 = vsyncpa [#allocation3], 1
    %194 = vsyncpa [#allocation6], 1
    %195 = vsyncpa [#allocation9], 1
    %196 = vsyncpa [#allocation4], 1

</llo_original>
